<compile_context>
chip_gen: v7x
topology: tpu7x:2x2x1
jax: 0.10.0
libtpu: 0.0.40
codegen_flags: <defaults>
</compile_context>

<pallas_src>
import numpy as np
import jax
import jax.numpy as jnp
from jax.experimental import pallas as pl
from jax.experimental.pallas import tpu as pltpu


def _round_up(x, m):
    return ((x + m - 1) // m) * m


# ------------------------------ Pallas kernel -------------------------------

def classnet_multi_kernel(idx_ref, x_ref, w1_ref, w2_ref, w3_ref, b_ref, o_ref):
    # idx_ref : (1,) int32 in SMEM (scalar prefetch) -- consumed by the index_maps to
    #           select the parameter set; unused in the body.
    # x_ref   : (N_pad, D)  f32    flattened, batch-padded input
    # w1_ref  : (D, H)      bf16
    # w2_ref  : (H, H)      bf16
    # w3_ref  : (H, C)      bf16
    # b_ref   : (3, H)      f32    rows = [b1, b2, b3 (zero-padded out to H)]
    # o_ref   : (N_pad, C)  f32
    del idx_ref
    C = o_ref.shape[1]

    h = jnp.dot(x_ref[...], w1_ref[...].astype(jnp.float32),
                preferred_element_type=jnp.float32) + b_ref[0:1, :]
    h = jnp.maximum(h, 0.0)
    # TODO(synk): train-mode Dropout (p=0.5, inplace) not implemented; identity at inference.

    h = jnp.dot(h, w2_ref[...].astype(jnp.float32),
                preferred_element_type=jnp.float32) + b_ref[1:2, :]
    h = jnp.maximum(h, 0.0)
    # TODO(synk): second train-mode Dropout likewise identity at inference.

    o_ref[...] = jnp.dot(h, w3_ref[...].astype(jnp.float32),
                         preferred_element_type=jnp.float32) + b_ref[2:3, :C]


# ------------------------- one-time parameter packing -----------------------

def pack_params(params):
    """Repack the stacked PyTorch-layout params ONCE; reuse the result every call.

    params (PyTorch Linear layout (out, in), stacked over num_comb):
      fc1_w (nc, H, D)  fc1_b (nc, H)
      fc2_w (nc, H, H)  fc2_b (nc, H)
      fc3_w (nc, C, H)  fc3_b (nc, C)
    """
    num_comb, H, D = params["fc1_w"].shape
    C = params["fc3_w"].shape[1]

    w1 = jnp.transpose(params["fc1_w"], (0, 2, 1)).astype(jnp.bfloat16)   # (nc, D, H)
    w2 = jnp.transpose(params["fc2_w"], (0, 2, 1)).astype(jnp.bfloat16)   # (nc, H, H)
    w3 = jnp.transpose(params["fc3_w"], (0, 2, 1)).astype(jnp.bfloat16)   # (nc, H, C)

    b_all = jnp.zeros((num_comb, 3, H), jnp.float32)
    b_all = b_all.at[:, 0, :].set(params["fc1_b"].astype(jnp.float32))
    b_all = b_all.at[:, 1, :].set(params["fc2_b"].astype(jnp.float32))
    b_all = b_all.at[:, 2, :C].set(params["fc3_b"].astype(jnp.float32))

    return {"w1": w1, "w2": w2, "w3": w3, "b": b_all}


# --------------------------------- wrapper ----------------------------------

def classnet_multi_forward(x, idx, packed):
    """x: (N, ...) flattened from dim 1; idx: int32 in [0, num_comb); packed: pack_params()."""
    w1, w2, w3, b = packed["w1"], packed["w2"], packed["w3"], packed["b"]
    num_comb, D, H = w1.shape
    C = w3.shape[2]

    N = x.shape[0]
    xf = x.reshape(N, -1).astype(jnp.float32)
    assert xf.shape[1] == D, "flattened input dim does not match fc1 weights"

    N_pad = _round_up(N, 8)
    x_p = jnp.zeros((N_pad, D), jnp.float32).at[:N, :].set(xf)
    idx_arr = jnp.asarray(idx, jnp.int32).reshape((1,))

    cost = pl.CostEstimate(
        flops=2 * N_pad * (D * H + H * H + H * C),
        transcendentals=0,
        bytes_accessed=(N_pad * D * 4            # x
                        + (D * H + H * H + H * C) * 2   # selected bf16 weights
                        + 3 * H * 4              # packed biases
                        + N_pad * C * 4))        # output

    out_pad = pl.pallas_call(
        classnet_multi_kernel,
        out_shape=jax.ShapeDtypeStruct((N_pad, C), jnp.float32),
        grid_spec=pltpu.PrefetchScalarGridSpec(
            num_scalar_prefetch=1,
            grid=(1,),
            in_specs=[
                pl.BlockSpec((N_pad, D),   lambda i, idx: (0, 0)),
                pl.BlockSpec((None, D, H), lambda i, idx: (idx[0], 0, 0)),
                pl.BlockSpec((None, H, H), lambda i, idx: (idx[0], 0, 0)),
                pl.BlockSpec((None, H, C), lambda i, idx: (idx[0], 0, 0)),
                pl.BlockSpec((None, 3, H), lambda i, idx: (idx[0], 0, 0)),
            ],
            out_specs=pl.BlockSpec((N_pad, C), lambda i, idx: (0, 0)),
        ),
        compiler_params=pltpu.CompilerParams(
            dimension_semantics=("arbitrary",)),
        cost_estimate=cost,
    )(idx_arr, x_p, w1, w2, w3, b)

    return out_pad[:N, :]


# --------------------------- pure-JAX reference -----------------------------

def reference_forward(x, idx, params):
    # Original module semantics: f32 weights, f32 math.
    N = x.shape[0]
    xf = x.reshape(N, -1).astype(jnp.float32)
    hp = jax.lax.Precision.HIGHEST
    w1, b1 = params["fc1_w"][idx], params["fc1_b"][idx]
    w2, b2 = params["fc2_w"][idx], params["fc2_b"][idx]
    w3, b3 = params["fc3_w"][idx], params["fc3_b"][idx]
    h = jnp.maximum(jnp.matmul(xf, w1.T, precision=hp) + b1, 0.0)
    h = jnp.maximum(jnp.matmul(h, w2.T, precision=hp) + b2, 0.0)
    return jnp.matmul(h, w3.T, precision=hp) + b3


# ---------------------------------- main ------------------------------------

if __name__ == "__main__":
    # Module defaults: in_channels=32, base_channels=128, num_classes=5, num_phase=2
    # -> flattened input dim = 64, num_comb = C(4,2) = 6.
    in_channels, base_channels, num_classes, num_phase = 32, 128, 5, 2
    num_comb = 6
    D = in_channels * num_phase
    N = 2

    key = jax.random.PRNGKey(0)
    ks = jax.random.split(key, 8)
    params = {
        "fc1_w": 0.1 * jax.random.normal(ks[0], (num_comb, base_channels, D), jnp.float32),
        "fc1_b": 0.1 * jax.random.normal(ks[1], (num_comb, base_channels), jnp.float32),
        "fc2_w": 0.1 * jax.random.normal(ks[2], (num_comb, base_channels, base_channels), jnp.float32),
        "fc2_b": 0.1 * jax.random.normal(ks[3], (num_comb, base_channels), jnp.float32),
        "fc3_w": 0.1 * jax.random.normal(ks[4], (num_comb, num_classes, base_channels), jnp.float32),
        "fc3_b": 0.1 * jax.random.normal(ks[5], (num_comb, num_classes), jnp.float32),
    }

    # One-time packing (transpose + bf16 cast + bias concat) -- NOT per call.
    packed = jax.tree_util.tree_map(jax.block_until_ready, pack_params(params))

    # x is (N, num_phase, in_channels); forward flattens from dim 1 -> (N, 64)
    x = jax.random.normal(ks[6], (N, num_phase, in_channels), jnp.float32)
    idx = jnp.int32(3)  # which combination's parameter set to use

    forward = jax.jit(classnet_multi_forward)
    out = jax.block_until_ready(forward(x, idx, packed))

    ref = jax.block_until_ready(reference_forward(x, int(idx), params))
    assert out.shape == (N, num_classes)
    # bf16 weight storage introduces <~0.5% error; well inside this tolerance.
    np.testing.assert_allclose(np.asarray(out), np.asarray(ref), rtol=2e-2, atol=2e-2)

    print("KERNEL_OK")
</pallas_src>

<mosaic_0001>
module attributes {stable_mosaic.version = 11 : i64} {
  func.func @classnet_multi_kernel(%arg0: i32, %arg1: memref<1xi32, #tpu.memory_space<smem>>, %arg2: memref<8x64xf32, #tpu.memory_space<vmem>>, %arg3: memref<1x64x128xbf16, #tpu.memory_space<vmem>>, %arg4: memref<1x128x128xbf16, #tpu.memory_space<vmem>>, %arg5: memref<1x128x5xbf16, #tpu.memory_space<vmem>>, %arg6: memref<1x3x128xf32, #tpu.memory_space<vmem>>, %arg7: memref<8x5xf32, #tpu.memory_space<vmem>>) attributes {dimension_semantics = [#tpu.dimension_semantics<arbitrary>], iteration_bounds = array<i64: 1>, scalar_prefetch = 1 : i64, scratch_operands = 0 : i64, tpu.core_type = #tpu.core_type<tc>, window_params = [{pipeline_mode = #tpu.pipeline_mode<synchronous>, transform_indices = @transform_0, window_bounds = array<i64: 8, 64>}, {transform_indices = @transform_1, window_bounds = array<i64: 1, 64, 128>}, {transform_indices = @transform_2, window_bounds = array<i64: 1, 128, 128>}, {transform_indices = @transform_3, window_bounds = array<i64: 1, 128, 5>}, {transform_indices = @transform_4, window_bounds = array<i64: 1, 3, 128>}, {pipeline_mode = #tpu.pipeline_mode<synchronous>, transform_indices = @transform_5, window_bounds = array<i64: 8, 5>}]} {
    %c0 = arith.constant 0 : index
    %c0_0 = arith.constant 0 : index
    %0 = vector.load %arg2[%c0, %c0_0] : memref<8x64xf32, #tpu.memory_space<vmem>>, vector<8x64xf32>
    %c0_1 = arith.constant 0 : index
    %c0_2 = arith.constant 0 : index
    %c0_3 = arith.constant 0 : index
    %1 = vector.load %arg3[%c0_1, %c0_2, %c0_3] : memref<1x64x128xbf16, #tpu.memory_space<vmem>>, vector<1x64x128xbf16>
    %2 = vector.shape_cast %1 : vector<1x64x128xbf16> to vector<64x128xbf16>
    %3 = arith.extf %2 : vector<64x128xbf16> to vector<64x128xf32>
    %cst = arith.constant dense<0.000000e+00> : vector<8x128xf32>
    %4 = tpu.matmul %0, %3, %cst {dimension_numbers = #tpu.dot_dimension_numbers<[1], [0], [0], [1], [0, 0, 1, 1], [], []>} : vector<8x64xf32>, vector<64x128xf32>, vector<8x128xf32> -> vector<8x128xf32>
    %c0_4 = arith.constant 0 : index
    %c0_5 = arith.constant 0 : index
    %c0_6 = arith.constant 0 : index
    %5 = vector.load %arg6[%c0_4, %c0_5, %c0_6] : memref<1x3x128xf32, #tpu.memory_space<vmem>>, vector<1x1x128xf32>
    %6 = vector.shape_cast %5 : vector<1x1x128xf32> to vector<1x128xf32>
    %7 = vector.broadcast %6 : vector<1x128xf32> to vector<8x128xf32>
    %8 = arith.addf %4, %7 : vector<8x128xf32>
    %cst_7 = arith.constant 0.000000e+00 : f32
    %9 = vector.broadcast %cst_7 : f32 to vector<8x128xf32>
    %10 = arith.maximumf %8, %9 : vector<8x128xf32>
    %c0_8 = arith.constant 0 : index
    %c0_9 = arith.constant 0 : index
    %c0_10 = arith.constant 0 : index
    %11 = vector.load %arg4[%c0_8, %c0_9, %c0_10] : memref<1x128x128xbf16, #tpu.memory_space<vmem>>, vector<1x128x128xbf16>
    %12 = vector.shape_cast %11 : vector<1x128x128xbf16> to vector<128x128xbf16>
    %13 = arith.extf %12 : vector<128x128xbf16> to vector<128x128xf32>
    %cst_11 = arith.constant dense<0.000000e+00> : vector<8x128xf32>
    %14 = tpu.matmul %10, %13, %cst_11 {dimension_numbers = #tpu.dot_dimension_numbers<[1], [0], [0], [1], [0, 0, 1, 1], [], []>} : vector<8x128xf32>, vector<128x128xf32>, vector<8x128xf32> -> vector<8x128xf32>
    %c0_12 = arith.constant 0 : index
    %c1 = arith.constant 1 : index
    %c0_13 = arith.constant 0 : index
    %15 = vector.load %arg6[%c0_12, %c1, %c0_13] : memref<1x3x128xf32, #tpu.memory_space<vmem>>, vector<1x1x128xf32>
    %16 = vector.shape_cast %15 : vector<1x1x128xf32> to vector<1x128xf32>
    %17 = vector.broadcast %16 : vector<1x128xf32> to vector<8x128xf32>
    %18 = arith.addf %14, %17 : vector<8x128xf32>
    %cst_14 = arith.constant 0.000000e+00 : f32
    %19 = vector.broadcast %cst_14 : f32 to vector<8x128xf32>
    %20 = arith.maximumf %18, %19 : vector<8x128xf32>
    %c0_15 = arith.constant 0 : index
    %c0_16 = arith.constant 0 : index
    %c0_17 = arith.constant 0 : index
    %21 = vector.load %arg5[%c0_15, %c0_16, %c0_17] : memref<1x128x5xbf16, #tpu.memory_space<vmem>>, vector<1x128x5xbf16>
    %22 = vector.shape_cast %21 : vector<1x128x5xbf16> to vector<128x5xbf16>
    %23 = arith.extf %22 : vector<128x5xbf16> to vector<128x5xf32>
    %cst_18 = arith.constant dense<0.000000e+00> : vector<8x5xf32>
    %24 = tpu.matmul %20, %23, %cst_18 {dimension_numbers = #tpu.dot_dimension_numbers<[1], [0], [0], [1], [0, 0, 1, 1], [], []>} : vector<8x128xf32>, vector<128x5xf32>, vector<8x5xf32> -> vector<8x5xf32>
    %c0_19 = arith.constant 0 : index
    %c2 = arith.constant 2 : index
    %c0_20 = arith.constant 0 : index
    %25 = vector.load %arg6[%c0_19, %c2, %c0_20] : memref<1x3x128xf32, #tpu.memory_space<vmem>>, vector<1x1x5xf32>
    %26 = vector.shape_cast %25 : vector<1x1x5xf32> to vector<1x5xf32>
    %27 = vector.broadcast %26 : vector<1x5xf32> to vector<8x5xf32>
    %28 = arith.addf %24, %27 : vector<8x5xf32>
    %c0_21 = arith.constant 0 : index
    %c0_22 = arith.constant 0 : index
    %29 = vector.load %arg7[%c0_21, %c0_22] : memref<8x5xf32, #tpu.memory_space<vmem>>, vector<8x5xf32>
    tpu.vector_store %arg7[%c0_21, %c0_22], %28 {strides = array<i32>} : memref<8x5xf32, #tpu.memory_space<vmem>>, vector<8x5xf32>,
    return
  }
  func.func @transform_0(%arg0: i32, %arg1: memref<1xi32, #tpu.memory_space<smem>>) -> (i32, i32) {
    %c0_i32 = arith.constant 0 : i32
    %c0_i32_0 = arith.constant 0 : i32
    %c0_i32_1 = arith.constant 0 : i32
    return %c0_i32, %c0_i32_0 : i32, i32
  }
  func.func @transform_1(%arg0: i32, %arg1: memref<1xi32, #tpu.memory_space<smem>>) -> (i32, i32, i32) {
    %c0 = arith.constant 0 : index
    %0 = memref.load %arg1[%c0] : memref<1xi32, #tpu.memory_space<smem>>
    %c0_i32 = arith.constant 0 : i32
    %c0_i32_0 = arith.constant 0 : i32
    %c0_i32_1 = arith.constant 0 : i32
    return %0, %c0_i32, %c0_i32_0 : i32, i32, i32
  }
  func.func @transform_2(%arg0: i32, %arg1: memref<1xi32, #tpu.memory_space<smem>>) -> (i32, i32, i32) {
    %c0 = arith.constant 0 : index
    %0 = memref.load %arg1[%c0] : memref<1xi32, #tpu.memory_space<smem>>
    %c0_i32 = arith.constant 0 : i32
    %c0_i32_0 = arith.constant 0 : i32
    %c0_i32_1 = arith.constant 0 : i32
    return %0, %c0_i32, %c0_i32_0 : i32, i32, i32
  }
  func.func @transform_3(%arg0: i32, %arg1: memref<1xi32, #tpu.memory_space<smem>>) -> (i32, i32, i32) {
    %c0 = arith.constant 0 : index
    %0 = memref.load %arg1[%c0] : memref<1xi32, #tpu.memory_space<smem>>
    %c0_i32 = arith.constant 0 : i32
    %c0_i32_0 = arith.constant 0 : i32
    %c0_i32_1 = arith.constant 0 : i32
    return %0, %c0_i32, %c0_i32_0 : i32, i32, i32
  }
  func.func @transform_4(%arg0: i32, %arg1: memref<1xi32, #tpu.memory_space<smem>>) -> (i32, i32, i32) {
    %c0 = arith.constant 0 : index
    %0 = memref.load %arg1[%c0] : memref<1xi32, #tpu.memory_space<smem>>
    %c0_i32 = arith.constant 0 : i32
    %c0_i32_0 = arith.constant 0 : i32
    %c0_i32_1 = arith.constant 0 : i32
    return %0, %c0_i32, %c0_i32_0 : i32, i32, i32
  }
  func.func @transform_5(%arg0: i32, %arg1: memref<1xi32, #tpu.memory_space<smem>>) -> (i32, i32) {
    %c0_i32 = arith.constant 0 : i32
    %c0_i32_0 = arith.constant 0 : i32
    %c0_i32_1 = arith.constant 0 : i32
    return %c0_i32, %c0_i32_0 : i32, i32
  }
}

</mosaic_0001>

<llo_original>
// kernel: classnet_multi_forward.1
$region0: #{classnet_multi_forward.1}
  #allocation0 [shape = 'u32[]', space=smem, size = 0x4, offset = 0x4, fixed_abs, tag = 'smem constant byte address 0x4 - core index']
  #allocation1 [shape = 'u32[144,128]{1,0:T(1,128)}', space=vmem, size = 0x12000, scoped, tag = 'internal scratch']
  #allocation2 [shape = 's32[1]{0}', space=sflag, size = 0x4, scoped, tag = 'scoped memory for classnet_multi_forward.1']
  #allocation3 [shape = 's32[1]{0:T(128)S(6)}', space=smem, size = 0x200, scoped, tag = 'prefetched SMEM operand 0']
  %s0 = inlined_call_operand.<no memory space> [shape: s32[1], index: 0, kind: input, shape index: {}]
  %s1 = inlined_call_operand.vmem [shape: f32[8,64], index: 1, kind: input, shape index: {}]
  %s2 = inlined_call_operand.hbm [shape: bf16[6,64,128], index: 2, kind: input, shape index: {}]
  %s3 = inlined_call_operand.vmem [shape: bf16[6,128,128], index: 3, kind: input, shape index: {}]
  %s4 = inlined_call_operand.vmem [shape: bf16[6,128,5], index: 4, kind: input, shape index: {}]
  %s5 = inlined_call_operand.vmem [shape: f32[6,3,128], index: 5, kind: input, shape index: {}]
  %s6 = inlined_call_operand.vmem [shape: f32[8,5], index: 6, kind: output, shape index: {}]
  %s7 = sld [smem:[#allocation0]]
  $region34: #{classnet_multi_forward.1} parent=0
    _
  %s9 = ssub.s32 1, %s7
  %s10 = scalar_select 0, %s9, %s7
  %11 = sst [smem:[#allocation3]] %s0
  $region1: #{classnet_multi_forward.1} parent=0
    #allocation4 [shape = 'u8[16384]{0}', space=vmem, size = 0x4000, scoped, tag = 'input window, operand 2, single buffered']
    #allocation5 [shape = 's32[1]{0}', space=sflag, size = 0x4, scoped, tag = 'scoped memory for classnet_multi_forward.1']
    %12 = vsyncpa [#allocation5], 0
    // Predicated region
    $region2: #{classnet_multi_forward.1} parent=1 // pred_check
      _
    $region3: #{classnet_multi_forward.1} parent=1 // pred_check_branch
      %14 = sbr.rel (0) target = $region5
    $region4: #{classnet_multi_forward.1} parent=1 // pred_region
      _
    $region5: #{classnet_multi_forward.1} parent=1 // pred_fallthru
      _
    // Predicated region
    $region6: #{classnet_multi_forward.1} parent=1 // pred_check
      _
    $region7: #{classnet_multi_forward.1} parent=1 // pred_check_branch
      %16 = sbr.rel (0) target = $region9
    $region8: #{classnet_multi_forward.1} parent=1 // pred_region
      %s17 = sld [smem:[#allocation3]]
      %s19 = ssub.s32 512, 512
      %20 = vsyncadd [#allocation5], %s19
      %s21 = smul.addr %s17, 8
      %s22 = smul.addr %s21, 64
      %s23 = scalar_lea.hbm %s2, %s22
      %s24 = sshll.u32 [#allocation4], 4
      %s25 = int_to_ptr.vmem [resolvable:$true] %s24
      %30 = dma.hbm_to_vmem [thread:$0]  %s23, 512, %s25, [#allocation5], 64, 64, 4
    $region9: #{classnet_multi_forward.1} parent=1 // pred_fallthru
      _
    // Predicated region
    $region10: #{classnet_multi_forward.1} parent=1 // pred_check
      _
    $region11: #{classnet_multi_forward.1} parent=1 // pred_check_branch
      %32 = sbr.rel (0) target = $region13
    $region12: #{classnet_multi_forward.1} parent=1 // pred_region
      %s33 = sld [smem:[#allocation3]]
      %p34 = scmp.lt.s32.totalorder %s33, 5
      %s35 = scalar_select %p34, %s33, 5
      %s36 = smul.addr %s35, 16
      %s37 = smul.addr %s36, 4
      %s38 = scalar_lea.vmem %s3, %s37
      %s39 = sld [smem:[#allocation3]]
    $region13: #{classnet_multi_forward.1} parent=1 // pred_fallthru
      _
    // Predicated region
    $region14: #{classnet_multi_forward.1} parent=1 // pred_check
      _
    $region15: #{classnet_multi_forward.1} parent=1 // pred_check_branch
      %41 = sbr.rel (0) target = $region17
    $region16: #{classnet_multi_forward.1} parent=1 // pred_region
      %s42 = sld [smem:[#allocation3]]
      %p43 = scmp.lt.s32.totalorder %s42, 5
      %s44 = scalar_select %p43, %s42, 5
      %s45 = smul.addr %s44, 16
      %s46 = smul.addr %s45, 4
      %s47 = scalar_lea.vmem %s4, %s46
      %s48 = sld [smem:[#allocation3]]
    $region17: #{classnet_multi_forward.1} parent=1 // pred_fallthru
      _
    // Predicated region
    $region18: #{classnet_multi_forward.1} parent=1 // pred_check
      _
    $region19: #{classnet_multi_forward.1} parent=1 // pred_check_branch
      %50 = sbr.rel (0) target = $region21
    $region20: #{classnet_multi_forward.1} parent=1 // pred_region
      %s51 = sld [smem:[#allocation3]]
      %p52 = scmp.lt.s32.totalorder %s51, 5
      %s53 = scalar_select %p52, %s51, 5
      %s54 = smul.addr %s53, 4
      %s55 = scalar_lea.vmem %s5, %s54
      %s56 = sld [smem:[#allocation3]]
    $region21: #{classnet_multi_forward.1} parent=1 // pred_fallthru
      _
    // Predicated region
    $region22: #{classnet_multi_forward.1} parent=1 // pred_check
      _
    $region23: #{classnet_multi_forward.1} parent=1 // pred_check_branch
      %58 = sbr.rel (0) target = $region25
    $region24: #{classnet_multi_forward.1} parent=1 // pred_region
      %59 = dma.done [#allocation5], 512
    $region25: #{classnet_multi_forward.1} parent=1 // pred_fallthru
      _
    %s60 = sld [smem:[#allocation3]]
    %p61 = scmp.lt.s32.totalorder %s60, 5
    %s62 = scalar_select %p61, %s60, 5
    %s63 = smul.addr %s62, 16
    %s64 = smul.addr %s63, 4
    %s65 = scalar_lea.vmem %s3, %s64
    %s66 = sld [smem:[#allocation3]]
    %p67 = scmp.lt.s32.totalorder %s66, 5
    %s68 = scalar_select %p67, %s66, 5
    %s69 = smul.addr %s68, 16
    %s70 = smul.addr %s69, 4
    %s71 = scalar_lea.vmem %s4, %s70
    %s72 = sld [smem:[#allocation3]]
    %p73 = scmp.lt.s32.totalorder %s72, 5
    %s74 = scalar_select %p73, %s72, 5
    %s75 = smul.addr %s74, 4
    %s76 = scalar_lea.vmem %s5, %s75
    %s77 = sld [smem:[#allocation3]]
    %s78 = sld [smem:[#allocation3]]
    %p79 = scmp.lt.s32.totalorder %s78, 5
    %s80 = scalar_select %p79, %s78, 5
    %s81 = smul.addr %s80, 16
    %s82 = smul.addr %s81, 4
    %s83 = scalar_lea.vmem %s3, %s82
    %s84 = sld [smem:[#allocation3]]
    %s85 = sld [smem:[#allocation3]]
    %p86 = scmp.lt.s32.totalorder %s85, 5
    %s87 = scalar_select %p86, %s85, 5
    %s88 = smul.addr %s87, 16
    %s89 = smul.addr %s88, 4
    %s90 = scalar_lea.vmem %s4, %s89
    %s91 = sld [smem:[#allocation3]]
    %s92 = sld [smem:[#allocation3]]
    %p93 = scmp.lt.s32.totalorder %s92, 5
    %s94 = scalar_select %p93, %s92, 5
    %s95 = smul.addr %s94, 4
    %s96 = scalar_lea.vmem %s5, %s95
    %s97 = sld [smem:[#allocation3]]
    %v98 = vld [vmem:[%s1] sm:$0xff]
    %v99 = vld [vmem:[#allocation4] sm:$0xf]
    %v100 = vld [vmem:[#allocation4 + $0x4] sm:$0xf]
    %v101 = vld [vmem:[#allocation4 + $0x8] sm:$0xf]
    %v102 = vld [vmem:[#allocation4 + $0xc] sm:$0xf]
    %v103 = vld [vmem:[#allocation4 + $0x10] sm:$0xf]
    %v104 = vld [vmem:[#allocation4 + $0x14] sm:$0xf]
    %v105 = vld [vmem:[#allocation4 + $0x18] sm:$0xf]
    %v106 = vld [vmem:[#allocation4 + $0x1c] sm:$0xf]
    %v107 = vunpack.c.l.bf16 %v99
    %v108 = vunpack.c.l.bf16 %v100
    %v109 = vunpack.c.l.bf16 %v101
    %v110 = vunpack.c.l.bf16 %v102
    %v111 = vunpack.c.l.bf16 %v103
    %v112 = vunpack.c.l.bf16 %v104
    %v113 = vunpack.c.l.bf16 %v105
    %v114 = vunpack.c.l.bf16 %v106
    %v115 = vld [vmem:[%s96] sm:$0x1]
    %v116 = vlaneseq
    %v117 = vshrl.u32 %v116, 7
    %v118 = vsub.s32 0, %v117
    %v119 = vrot.slane %v115, %v118
    %vm120 = vcmask 523264
    %v122 = vsel %vm120, %v98, 0
    %124 = vmatprep.subr.mxu0 0.0
    %125 = vmatpush1.msra.mxu0 %v107
    %126 = vmatprep.subr.mxu0 0.0
    %127 = vmatpush1.msra.mxu0 %v108
    %128 = vmatprep.subr.mxu0 0.0
    %129 = vmatpush1.msra.mxu0 %v109
    %130 = vmatprep.subr.mxu0 0.0
    %131 = vmatpush1.msra.mxu0 %v110
    %132 = vmatprep.subr.mxu0 0.0
    %133 = vmatpush1.msra.mxu0 %v111
    %134 = vmatprep.subr.mxu0 0.0
    %135 = vmatpush1.msra.mxu0 %v112
    %136 = vmatprep.subr.mxu0 0.0
    %137 = vmatpush1.msra.mxu0 %v113
    %138 = vmatprep.subr.mxu0 0.0
    %139 = vmatpush1.msra.mxu0 %v114
    %140 = vmatprep.subr.mxu0 0.0
    %141 = vmatpush1.msra.mxu0 0.0
    %142 = vmatprep.subr.mxu0 0.0
    %143 = vmatpush1.msra.mxu0 0.0
    %144 = vmatprep.subr.mxu0 0.0
    %145 = vmatpush1.msra.mxu0 0.0
    %146 = vmatprep.subr.mxu0 0.0
    %147 = vmatpush1.msra.mxu0 0.0
    %148 = vmatprep.subr.mxu0 0.0
    %149 = vmatpush1.msra.mxu0 0.0
    %150 = vmatprep.subr.mxu0 0.0
    %151 = vmatpush1.msra.mxu0 0.0
    %152 = vmatprep.subr.mxu0 0.0
    %153 = vmatpush1.msra.mxu0 0.0
    %154 = vmatprep.subr.mxu0 0.0
    %155 = vmatpush1.msra.mxu0 0.0
    %156 = vmatprep.subr.mxu0 0.0
    %157 = vmatpush1.msra.mxu0 0.0
    %158 = vmatprep.subr.mxu0 0.0
    %159 = vmatpush1.msra.mxu0 0.0
    %160 = vmatprep.subr.mxu0 0.0
    %161 = vmatpush1.msra.mxu0 0.0
    %162 = vmatprep.subr.mxu0 0.0
    %163 = vmatpush1.msra.mxu0 0.0
    %164 = vmatprep.subr.mxu0 0.0
    %165 = vmatpush1.msra.mxu0 0.0
    %166 = vmatprep.subr.mxu0 0.0
    %167 = vmatpush1.msra.mxu0 0.0
    %168 = vmatprep.subr.mxu0 0.0
    %169 = vmatpush1.msra.mxu0 0.0
    %170 = vmatprep.subr.mxu0 0.0
    %171 = vmatpush1.msra.mxu0 0.0
    %172 = vmatprep.subr.mxu0 0.0
    %173 = vmatpush1.msra.mxu0 0.0
    %174 = vmatprep.subr.mxu0 0.0
    %175 = vmatpush1.msra.mxu0 0.0
    %176 = vmatprep.subr.mxu0 0.0
    %177 = vmatpush1.msra.mxu0 0.0
    %178 = vmatprep.subr.mxu0 0.0
    %179 = vmatpush1.msra.mxu0 0.0
    %180 = vmatprep.subr.mxu0 0.0
    %181 = vmatpush1.msra.mxu0 0.0
    %182 = vmatprep.subr.mxu0 0.0
    %183 = vmatpush1.msra.mxu0 0.0
    %184 = vmatprep.subr.mxu0 0.0
    %185 = vmatpush1.msra.mxu0 0.0
    %186 = vmatprep.subr.mxu0 0.0
    %187 = vmatpush1.msra.mxu0 0.0
    %188 = vmatprep.mubr.f32.mxu0 0.0
    %189 = vmatmul.mubr.f32.gmra.mrb[0].mxu0 %v122
    %v190 = vpop.f32.mrb[0].mxu0
    %v191 = vadd.f32 %v119, %v190
    %v192 = vpop.f32.mrb[0].mxu0
    %193 = vdwg.mxu0
    %v194 = vmax.f32 %v191, 0.0
    %v195 = vld [vmem:[%s83] sm:$0xf]
    %v196 = vld [vmem:[%s83 + $0x4] sm:$0xf]
    %v197 = vld [vmem:[%s83 + $0x8] sm:$0xf]
    %v198 = vld [vmem:[%s83 + $0xc] sm:$0xf]
    %v199 = vld [vmem:[%s83 + $0x10] sm:$0xf]
    %v200 = vld [vmem:[%s83 + $0x14] sm:$0xf]
    %v201 = vld [vmem:[%s83 + $0x18] sm:$0xf]
    %v202 = vld [vmem:[%s83 + $0x1c] sm:$0xf]
    %v203 = vld [vmem:[%s83 + $0x20] sm:$0xf]
    %v204 = vld [vmem:[%s83 + $0x24] sm:$0xf]
    %v205 = vld [vmem:[%s83 + $0x28] sm:$0xf]
    %v206 = vld [vmem:[%s83 + $0x2c] sm:$0xf]
    %v207 = vld [vmem:[%s83 + $0x30] sm:$0xf]
    %v208 = vld [vmem:[%s83 + $0x34] sm:$0xf]
    %v209 = vld [vmem:[%s83 + $0x38] sm:$0xf]
    %v210 = vld [vmem:[%s83 + $0x3c] sm:$0xf]
    %v211 = vunpack.c.l.bf16 %v195
    %v212 = vunpack.c.l.bf16 %v196
    %v213 = vunpack.c.l.bf16 %v197
    %v214 = vunpack.c.l.bf16 %v198
    %v215 = vunpack.c.l.bf16 %v199
    %v216 = vunpack.c.l.bf16 %v200
    %v217 = vunpack.c.l.bf16 %v201
    %v218 = vunpack.c.l.bf16 %v202
    %v219 = vunpack.c.l.bf16 %v203
    %v220 = vunpack.c.l.bf16 %v204
    %v221 = vunpack.c.l.bf16 %v205
    %v222 = vunpack.c.l.bf16 %v206
    %v223 = vunpack.c.l.bf16 %v207
    %v224 = vunpack.c.l.bf16 %v208
    %v225 = vunpack.c.l.bf16 %v209
    %v226 = vunpack.c.l.bf16 %v210
    %v227 = vld [vmem:[%s96 + $0x1] sm:$0x1]
    %v228 = vlaneseq
    %v229 = vshrl.u32 %v228, 7
    %v230 = vsub.s32 0, %v229
    %v231 = vrot.slane %v227, %v230
    %232 = vmatprep.subr.mxu0 0.0
    %233 = vmatpush1.msra.mxu0 %v211
    %234 = vmatprep.subr.mxu0 0.0
    %235 = vmatpush1.msra.mxu0 %v212
    %236 = vmatprep.subr.mxu0 0.0
    %237 = vmatpush1.msra.mxu0 %v213
    %238 = vmatprep.subr.mxu0 0.0
    %239 = vmatpush1.msra.mxu0 %v214
    %240 = vmatprep.subr.mxu0 0.0
    %241 = vmatpush1.msra.mxu0 %v215
    %242 = vmatprep.subr.mxu0 0.0
    %243 = vmatpush1.msra.mxu0 %v216
    %244 = vmatprep.subr.mxu0 0.0
    %245 = vmatpush1.msra.mxu0 %v217
    %246 = vmatprep.subr.mxu0 0.0
    %247 = vmatpush1.msra.mxu0 %v218
    %248 = vmatprep.subr.mxu0 0.0
    %249 = vmatpush1.msra.mxu0 %v219
    %250 = vmatprep.subr.mxu0 0.0
    %251 = vmatpush1.msra.mxu0 %v220
    %252 = vmatprep.subr.mxu0 0.0
    %253 = vmatpush1.msra.mxu0 %v221
    %254 = vmatprep.subr.mxu0 0.0
    %255 = vmatpush1.msra.mxu0 %v222
    %256 = vmatprep.subr.mxu0 0.0
    %257 = vmatpush1.msra.mxu0 %v223
    %258 = vmatprep.subr.mxu0 0.0
    %259 = vmatpush1.msra.mxu0 %v224
    %260 = vmatprep.subr.mxu0 0.0
    %261 = vmatpush1.msra.mxu0 %v225
    %262 = vmatprep.subr.mxu0 0.0
    %263 = vmatpush1.msra.mxu0 %v226
    %264 = vmatprep.subr.mxu0 0.0
    %265 = vmatpush1.msra.mxu0 0.0
    %266 = vmatprep.subr.mxu0 0.0
    %267 = vmatpush1.msra.mxu0 0.0
    %268 = vmatprep.subr.mxu0 0.0
    %269 = vmatpush1.msra.mxu0 0.0
    %270 = vmatprep.subr.mxu0 0.0
    %271 = vmatpush1.msra.mxu0 0.0
    %272 = vmatprep.subr.mxu0 0.0
    %273 = vmatpush1.msra.mxu0 0.0
    %274 = vmatprep.subr.mxu0 0.0
    %275 = vmatpush1.msra.mxu0 0.0
    %276 = vmatprep.subr.mxu0 0.0
    %277 = vmatpush1.msra.mxu0 0.0
    %278 = vmatprep.subr.mxu0 0.0
    %279 = vmatpush1.msra.mxu0 0.0
    %280 = vmatprep.subr.mxu0 0.0
    %281 = vmatpush1.msra.mxu0 0.0
    %282 = vmatprep.subr.mxu0 0.0
    %283 = vmatpush1.msra.mxu0 0.0
    %284 = vmatprep.subr.mxu0 0.0
    %285 = vmatpush1.msra.mxu0 0.0
    %286 = vmatprep.subr.mxu0 0.0
    %287 = vmatpush1.msra.mxu0 0.0
    %288 = vmatprep.subr.mxu0 0.0
    %289 = vmatpush1.msra.mxu0 0.0
    %290 = vmatprep.subr.mxu0 0.0
    %291 = vmatpush1.msra.mxu0 0.0
    %292 = vmatprep.subr.mxu0 0.0
    %293 = vmatpush1.msra.mxu0 0.0
    %294 = vmatprep.subr.mxu0 0.0
    %295 = vmatpush1.msra.mxu0 0.0
    %296 = vmatprep.mubr.f32.mxu0 0.0
    %297 = vmatmul.mubr.f32.gmra.mrb[0].mxu0 %v194
    %v298 = vpop.f32.mrb[0].mxu0
    %v299 = vadd.f32 %v231, %v298
    %v300 = vpop.f32.mrb[0].mxu0
    %301 = vdwg.mxu0
    %v302 = vmax.f32 %v299, 0.0
    %v303 = vld [vmem:[%s90] sm:$0xf]
    %v304 = vld [vmem:[%s90 + $0x4] sm:$0xf]
    %v305 = vld [vmem:[%s90 + $0x8] sm:$0xf]
    %v306 = vld [vmem:[%s90 + $0xc] sm:$0xf]
    %v307 = vld [vmem:[%s90 + $0x10] sm:$0xf]
    %v308 = vld [vmem:[%s90 + $0x14] sm:$0xf]
    %v309 = vld [vmem:[%s90 + $0x18] sm:$0xf]
    %v310 = vld [vmem:[%s90 + $0x1c] sm:$0xf]
    %v311 = vld [vmem:[%s90 + $0x20] sm:$0xf]
    %v312 = vld [vmem:[%s90 + $0x24] sm:$0xf]
    %v313 = vld [vmem:[%s90 + $0x28] sm:$0xf]
    %v314 = vld [vmem:[%s90 + $0x2c] sm:$0xf]
    %v315 = vld [vmem:[%s90 + $0x30] sm:$0xf]
    %v316 = vld [vmem:[%s90 + $0x34] sm:$0xf]
    %v317 = vld [vmem:[%s90 + $0x38] sm:$0xf]
    %v318 = vld [vmem:[%s90 + $0x3c] sm:$0xf]
    %v319 = vunpack.c.l.bf16 %v303
    %v320 = vunpack.c.l.bf16 %v304
    %v321 = vunpack.c.l.bf16 %v305
    %v322 = vunpack.c.l.bf16 %v306
    %v323 = vunpack.c.l.bf16 %v307
    %v324 = vunpack.c.l.bf16 %v308
    %v325 = vunpack.c.l.bf16 %v309
    %v326 = vunpack.c.l.bf16 %v310
    %v327 = vunpack.c.l.bf16 %v311
    %v328 = vunpack.c.l.bf16 %v312
    %v329 = vunpack.c.l.bf16 %v313
    %v330 = vunpack.c.l.bf16 %v314
    %v331 = vunpack.c.l.bf16 %v315
    %v332 = vunpack.c.l.bf16 %v316
    %v333 = vunpack.c.l.bf16 %v317
    %v334 = vunpack.c.l.bf16 %v318
    %v335 = vld [vmem:[%s96 + $0x2] sm:$0x1]
    %v336 = vlaneseq
    %v337 = vshrl.u32 %v336, 7
    %v338 = vsub.s32 0, %v337
    %v339 = vrot.slane %v335, %v338
    %340 = vmatprep.subr.mxu0 0.0
    %341 = vmatpush1.msra.mxu0 %v319
    %342 = vmatprep.subr.mxu0 0.0
    %343 = vmatpush1.msra.mxu0 %v320
    %344 = vmatprep.subr.mxu0 0.0
    %345 = vmatpush1.msra.mxu0 %v321
    %346 = vmatprep.subr.mxu0 0.0
    %347 = vmatpush1.msra.mxu0 %v322
    %348 = vmatprep.subr.mxu0 0.0
    %349 = vmatpush1.msra.mxu0 %v323
    %350 = vmatprep.subr.mxu0 0.0
    %351 = vmatpush1.msra.mxu0 %v324
    %352 = vmatprep.subr.mxu0 0.0
    %353 = vmatpush1.msra.mxu0 %v325
    %354 = vmatprep.subr.mxu0 0.0
    %355 = vmatpush1.msra.mxu0 %v326
    %356 = vmatprep.subr.mxu0 0.0
    %357 = vmatpush1.msra.mxu0 %v327
    %358 = vmatprep.subr.mxu0 0.0
    %359 = vmatpush1.msra.mxu0 %v328
    %360 = vmatprep.subr.mxu0 0.0
    %361 = vmatpush1.msra.mxu0 %v329
    %362 = vmatprep.subr.mxu0 0.0
    %363 = vmatpush1.msra.mxu0 %v330
    %364 = vmatprep.subr.mxu0 0.0
    %365 = vmatpush1.msra.mxu0 %v331
    %366 = vmatprep.subr.mxu0 0.0
    %367 = vmatpush1.msra.mxu0 %v332
    %368 = vmatprep.subr.mxu0 0.0
    %369 = vmatpush1.msra.mxu0 %v333
    %370 = vmatprep.subr.mxu0 0.0
    %371 = vmatpush1.msra.mxu0 %v334
    %372 = vmatprep.subr.mxu0 0.0
    %373 = vmatpush1.msra.mxu0 0.0
    %374 = vmatprep.subr.mxu0 0.0
    %375 = vmatpush1.msra.mxu0 0.0
    %376 = vmatprep.subr.mxu0 0.0
    %377 = vmatpush1.msra.mxu0 0.0
    %378 = vmatprep.subr.mxu0 0.0
    %379 = vmatpush1.msra.mxu0 0.0
    %380 = vmatprep.subr.mxu0 0.0
    %381 = vmatpush1.msra.mxu0 0.0
    %382 = vmatprep.subr.mxu0 0.0
    %383 = vmatpush1.msra.mxu0 0.0
    %384 = vmatprep.subr.mxu0 0.0
    %385 = vmatpush1.msra.mxu0 0.0
    %386 = vmatprep.subr.mxu0 0.0
    %387 = vmatpush1.msra.mxu0 0.0
    %388 = vmatprep.subr.mxu0 0.0
    %389 = vmatpush1.msra.mxu0 0.0
    %390 = vmatprep.subr.mxu0 0.0
    %391 = vmatpush1.msra.mxu0 0.0
    %392 = vmatprep.subr.mxu0 0.0
    %393 = vmatpush1.msra.mxu0 0.0
    %394 = vmatprep.subr.mxu0 0.0
    %395 = vmatpush1.msra.mxu0 0.0
    %396 = vmatprep.subr.mxu0 0.0
    %397 = vmatpush1.msra.mxu0 0.0
    %398 = vmatprep.subr.mxu0 0.0
    %399 = vmatpush1.msra.mxu0 0.0
    %400 = vmatprep.subr.mxu0 0.0
    %401 = vmatpush1.msra.mxu0 0.0
    %402 = vmatprep.subr.mxu0 0.0
    %403 = vmatpush1.msra.mxu0 0.0
    %404 = vmatprep.mubr.f32.mxu0 0.0
    %405 = vmatmul.mubr.f32.gmra.mrb[0].mxu0 %v302
    %v406 = vpop.f32.mrb[0].mxu0
    %v407 = vadd.f32 %v339, %v406
    %v408 = vpop.f32.mrb[0].mxu0
    %409 = vdwg.mxu0
    %vm410 = vcmask 39936
    %411 = vst.msk [vmem:[%s6] sm:$0xff] %vm410, %v407
    // Predicated region
    $region26: #{classnet_multi_forward.1} parent=1 // pred_check
      _
    $region27: #{classnet_multi_forward.1} parent=1 // pred_check_branch
      %413 = sbr.rel (0) target = $region29
    $region28: #{classnet_multi_forward.1} parent=1 // pred_region
      _
    $region29: #{classnet_multi_forward.1} parent=1 // pred_fallthru
      _
    // Predicated region
    $region30: #{classnet_multi_forward.1} parent=1 // pred_check
      _
    $region31: #{classnet_multi_forward.1} parent=1 // pred_check_branch
      %415 = sbr.rel (0) target = $region33
    $region32: #{classnet_multi_forward.1} parent=1 // pred_region
      _
    $region33: #{classnet_multi_forward.1} parent=1 // pred_fallthru
      _
    %416 = vsyncpa [#allocation5], 1

</llo_original>
